<compile_context>
chip_gen: v5e
topology: v5e:2x2
jax: 0.10.0
libtpu: 0.0.40
codegen_flags: <defaults>
</compile_context>

<pallas_src>
import functools

import jax
import jax.numpy as jnp
from jax import lax
from jax.experimental import pallas as pl
from jax.experimental.pallas import tpu as pltpu


def quartz_cell_kernel(x_ref, dw_w_ref, pw_w_ref, shift_ref, o_ref, xw_ref, *,
                       kernel_size, stride, dilation, activation,
                       halo_left, tap0, plain_lo, plain_hi, special_tiles):
    t = pl.program_id(1)                          # time-tile index
    c_in = x_ref.shape[1]
    tl = o_ref.shape[2]
    win_read = xw_ref.shape[1]
    cdt = xw_ref.dtype

    # ---- per-tile halo window build (VMEM->VMEM, amortized across the grid) ----
    # "plain" tiles: the whole window is inside [0, l_in) -> one aligned block copy
    if plain_lo < plain_hi:
        @pl.when((t >= plain_lo) & (t < plain_hi))
        def _():
            start = pl.multiple_of(t * (tl * stride) - halo_left, 128)
            xw_ref[...] = x_ref[0, :, pl.ds(start, win_read)].astype(cdt)

    # edge tiles: fully-static bounds (zero fill for the conv's implicit padding)
    for ti, w0, lo, hi in special_tiles:
        @pl.when(t == ti)
        def _(w0=w0, lo=lo, hi=hi):
            dst_lo = lo - w0
            dst_hi = hi - w0
            if dst_lo > 0:                        # left zero pad
                xw_ref[:, :dst_lo] = jnp.zeros((c_in, dst_lo), cdt)
            if hi > lo:
                xw_ref[:, dst_lo:dst_hi] = x_ref[0, :, lo:hi].astype(cdt)
            if dst_hi < win_read:                 # right zero pad
                xw_ref[:, dst_hi:] = jnp.zeros((c_in, win_read - dst_hi), cdt)

    # ---- depthwise conv over one (C_in, TL) tile (VPU) ----
    if kernel_size <= 8:                          # small K: static unroll, static slices
        dw_w = dw_w_ref[...]
        acc = jnp.zeros((c_in, tl), cdt)
        for k in range(kernel_size):
            s = tap0 + k * dilation               # static lane offset
            if stride == 1:
                tap = xw_ref[:, s:s + tl]
            else:
                tap = xw_ref[:, pl.ds(s, tl, stride=stride)]
            acc = acc + tap * dw_w[:, k:k + 1]
    else:                                         # large K: bounded-unroll tap loop
        def body(k, acc):
            s = tap0 + k * dilation
            if stride == 1:
                tap = xw_ref[:, pl.ds(s, tl)]
            else:
                tap = xw_ref[:, pl.ds(s, tl, stride=stride)]
            w_k = dw_w_ref[:, pl.ds(k, 1)]
            return acc + tap * w_k
        acc = lax.fori_loop(0, kernel_size, body,
                            jnp.zeros((c_in, tl), cdt), unroll=4)

    # ---- pointwise 1x1 conv (MXU, bf16 operands / f32 accumulate) ----
    # BN scale is pre-folded into pw_w; all biases + BN shift pre-folded into shift.
    y = jnp.dot(pw_w_ref[...], acc.astype(jnp.bfloat16),
                preferred_element_type=jnp.float32)
    y = y + shift_ref[...]
    if activation:
        y = jnp.maximum(y, 0.0)
    o_ref[0] = y.astype(o_ref.dtype)              # lane-dense NCL store


def quartz_cell(x_ncl, dw_w, dw_b, pw_w, pw_b,
                bn_gamma, bn_beta, bn_mean, bn_var,
                *, kernel_size, stride=1, dilation=1, activation=True, eps=1e-5,
                depthwise_dtype=None):
    """x_ncl: (N, C_in, L), matching the PyTorch Conv1d input layout."""
    n, c_in, l_in = x_ncl.shape
    c_out = pw_w.shape[0]
    pad = dilation * kernel_size // 2             # exactly as in the module
    l_out = (l_in + 2 * pad - dilation * (kernel_size - 1) - 1) // stride + 1

    f32 = jnp.float32
    if depthwise_dtype is None:
        # bf16 depthwise when the activations are already bf16 (v6e/v7x fast path);
        # keep f32 otherwise (also correct/fast on v5e which has no bf16 VPU).
        depthwise_dtype = jnp.bfloat16 if x_ncl.dtype == jnp.bfloat16 else jnp.float32
    cdt = depthwise_dtype
    csz = 2 if cdt == jnp.bfloat16 else 4

    # ---- generation-aware VMEM budget / tile candidates ----
    vmem_cap = None
    try:
        info = pltpu.get_tpu_info()
        for attr in ("vmem_capacity_bytes", "vmem_bytes", "vmem_size_bytes"):
            v = getattr(info, attr, None)
            if v is None:
                continue
            try:
                v = int(v)
            except Exception:
                continue
            if v > 0:
                vmem_cap = v
                break
    except Exception:
        vmem_cap = None
    if vmem_cap is None:
        vmem_cap = 64 * 2**20                      # conservative: assume v7x
    big_vmem = vmem_cap >= 100 * 2**20             # v5e/v6e (128 MiB) vs v7x (64 MiB)
    tl_candidates = (1024, 512, 256, 128) if big_vmem else (512, 256, 128)
    vmem_hard_cap = (100 if big_vmem else 48) * 2**20

    round_up = lambda v, m: -(-v // m) * m

    # Lane-dense output tile; pad l_out up to a multiple of TL (sliced after the call).
    tl = 128
    for cand in tl_candidates:
        if l_out >= cand and (round_up(l_out, cand) - l_out) * 8 <= l_out:
            tl = cand
            break
    l_out_padded = round_up(l_out, tl)
    num_t = l_out_padded // tl

    # Per-tile halo window geometry (window start is 128-aligned in input coords).
    halo_left = round_up(pad, 128) if pad > 0 else 0
    tap0 = halo_left - pad                         # static offset of tap k=0
    win_len = (tl - 1) * stride + tap0 + dilation * (kernel_size - 1) + 1
    win_read = round_up(win_len, 128)              # aligned read size for plain tiles

    # Classify tiles: "plain" windows are entirely inside [0, l_in) for the aligned
    # read; edge tiles get fully-static copy/zero bounds (handles the conv's padding).
    special_tiles, plain_tiles = [], []
    for ti in range(num_t):
        w0 = ti * tl * stride - halo_left
        if w0 >= 0 and w0 + win_read <= l_in:
            plain_tiles.append(ti)
        else:
            special_tiles.append((ti, w0, max(0, w0), min(l_in, w0 + win_len)))
    if plain_tiles and plain_tiles == list(range(plain_tiles[0], plain_tiles[-1] + 1)):
        plain_lo, plain_hi = plain_tiles[0], plain_tiles[-1] + 1
    else:                                          # defensive fallback (not expected)
        for ti in plain_tiles:
            w0 = ti * tl * stride - halo_left
            special_tiles.append((ti, w0, w0, min(l_in, w0 + win_len)))
        special_tiles.sort()
        plain_lo, plain_hi = 0, 0

    # ---- parameter folding (tiny, f32) ----
    dw_w2 = dw_w[:, 0, :].astype(cdt)                              # (C_in, K)
    pw_w2 = pw_w[:, :, 0].astype(f32)                              # (C_out, C_in)
    inv_std = 1.0 / jnp.sqrt(bn_var.astype(f32) + eps)
    bn_scale = bn_gamma.astype(f32) * inv_std                      # (C_out,)
    bn_shift = bn_beta.astype(f32) - bn_mean.astype(f32) * bn_scale
    w_fold = (bn_scale[:, None] * pw_w2).astype(jnp.bfloat16)      # (C_out, C_in) bf16
    shift = bn_scale * (pw_w2 @ dw_b.astype(f32) + pw_b.astype(f32)) + bn_shift
    shift = shift.reshape(c_out, 1).astype(f32)                    # (C_out, 1)

    kernel = functools.partial(
        quartz_cell_kernel,
        kernel_size=kernel_size, stride=stride, dilation=dilation,
        activation=activation, halo_left=halo_left, tap0=tap0,
        plain_lo=plain_lo, plain_hi=plain_hi, special_tiles=tuple(special_tiles))

    # Rough VMEM budget: double-buffered in/out blocks + window scratch + temporaries.
    isz = x_ncl.dtype.itemsize
    r8 = lambda v: round_up(v, 8)
    r128 = lambda v: round_up(v, 128)
    est = (2 * r8(c_in) * r128(l_in) * isz          # resident input block (dbl-buffered)
           + r8(c_in) * r128(win_read) * csz        # halo window scratch
           + 2 * r8(c_out) * r128(tl) * isz         # output tile (dbl-buffered)
           + 6 * r8(max(c_in, c_out)) * r128(tl) * 4
           + r8(c_out) * r128(c_in) * 2
           + r8(c_in) * r128(kernel_size) * csz)
    vmem_limit = int(min(max(32 * 2**20, 2 * est), vmem_hard_cap))

    out_padded = pl.pallas_call(
        kernel,
        out_shape=jax.ShapeDtypeStruct((n, c_out, l_out_padded), x_ncl.dtype),
        grid_spec=pltpu.PrefetchScalarGridSpec(
            num_scalar_prefetch=0,
            grid=(n, num_t),
            in_specs=[
                # Whole-sequence block, resident across the inner time-tile axis
                # (index map ignores t -> one HBM DMA per batch element).
                pl.BlockSpec((1, c_in, l_in), lambda b, t: (b, 0, 0)),
                pl.BlockSpec((c_in, kernel_size), lambda b, t: (0, 0)),
                pl.BlockSpec((c_out, c_in), lambda b, t: (0, 0)),
                pl.BlockSpec((c_out, 1), lambda b, t: (0, 0)),
            ],
            out_specs=pl.BlockSpec((1, c_out, tl), lambda b, t: (b, 0, t)),
            scratch_shapes=[pltpu.VMEM((c_in, win_read), cdt)],
        ),
        compiler_params=pltpu.CompilerParams(
            dimension_semantics=("parallel", "parallel"),
            vmem_limit_bytes=vmem_limit),
    )(x_ncl, dw_w2, w_fold, shift)

    if l_out_padded != l_out:
        out_padded = out_padded[:, :, :l_out]
    return out_padded


def quartz_cell_reference(x_ncl, dw_w, dw_b, pw_w, pw_b,
                          bn_gamma, bn_beta, bn_mean, bn_var,
                          *, kernel_size, stride=1, dilation=1,
                          activation=True, eps=1e-5):
    """Pure-JAX reference mirroring the PyTorch module (eval-mode BN)."""
    n, c_in, l = x_ncl.shape
    pad = dilation * kernel_size // 2
    xp = jnp.pad(x_ncl, ((0, 0), (0, 0), (pad, pad)))
    l_pad = l + 2 * pad
    l_out = (l_pad - dilation * (kernel_size - 1) - 1) // stride + 1

    y = jnp.zeros((n, c_in, l_out), jnp.float32)
    for k in range(kernel_size):
        start = k * dilation
        stop = start + stride * (l_out - 1) + 1
        y = y + xp[:, :, start:stop:stride] * dw_w[:, 0, k][None, :, None]
    y = y + dw_b[None, :, None]

    z = jnp.einsum('ncl,oc->nol', y, pw_w[:, :, 0]) + pw_b[None, :, None]
    z = (z - bn_mean[None, :, None]) / jnp.sqrt(bn_var + eps)[None, :, None]
    z = z * bn_gamma[None, :, None] + bn_beta[None, :, None]
    if activation:
        z = jnp.maximum(z, 0.0)
    return z


def _run_case(key, n, c_in, c_out, l, k, stride, dilation, activation):
    ks = jax.random.split(key, 8)
    x = jax.random.normal(ks[0], (n, c_in, l), dtype=jnp.float32)
    dw_w = 0.1 * jax.random.normal(ks[1], (c_in, 1, k), dtype=jnp.float32)
    dw_b = 0.1 * jax.random.normal(ks[2], (c_in,), dtype=jnp.float32)
    pw_w = 0.1 * jax.random.normal(ks[3], (c_out, c_in, 1), dtype=jnp.float32)
    pw_b = 0.1 * jax.random.normal(ks[4], (c_out,), dtype=jnp.float32)
    bn_gamma = 1.0 + 0.1 * jax.random.normal(ks[5], (c_out,), dtype=jnp.float32)
    bn_beta = 0.1 * jax.random.normal(ks[6], (c_out,), dtype=jnp.float32)
    bn_mean = 0.1 * jax.random.normal(ks[7], (c_out,), dtype=jnp.float32)
    bn_var = jnp.full((c_out,), 1.0, dtype=jnp.float32)

    out = quartz_cell(x, dw_w, dw_b, pw_w, pw_b,
                      bn_gamma, bn_beta, bn_mean, bn_var,
                      kernel_size=k, stride=stride, dilation=dilation,
                      activation=activation)
    out = jax.block_until_ready(out)

    ref = quartz_cell_reference(x, dw_w, dw_b, pw_w, pw_b,
                                bn_gamma, bn_beta, bn_mean, bn_var,
                                kernel_size=k, stride=stride, dilation=dilation,
                                activation=activation)
    assert out.shape == ref.shape, (out.shape, ref.shape)
    # bf16 MXU operands with f32 accumulation -> ~1e-3 level absolute error.
    assert jnp.allclose(out, ref, atol=1e-2, rtol=1e-2), \
        float(jnp.max(jnp.abs(out - ref)))


if __name__ == "__main__":
    key = jax.random.PRNGKey(0)
    k1, k2 = jax.random.split(key)

    # Case 1: small shapes consistent with the module (single padded output tile).
    _run_case(k1, n=2, c_in=8, c_out=16, l=16, k=3,
              stride=1, dilation=1, activation=True)

    # Case 2: multi-tile grid exercising the left-edge, plain (dynamic-start copy)
    # and right-edge window branches; activation disabled.
    _run_case(k2, n=1, c_in=8, c_out=8, l=384, k=5,
              stride=1, dilation=1, activation=False)

    print("KERNEL_OK")
</pallas_src>

<mosaic_0001>
module attributes {stable_mosaic.version = 11 : i64} {
  func.func @quartz_cell_kernel(%arg0: i32, %arg1: i32, %arg2: memref<1x8x16xf32, #tpu.memory_space<vmem>>, %arg3: memref<8x3xf32, #tpu.memory_space<vmem>>, %arg4: memref<16x8xbf16, #tpu.memory_space<vmem>>, %arg5: memref<16x1xf32, #tpu.memory_space<vmem>>, %arg6: memref<1x16x128xf32, #tpu.memory_space<vmem>>, %arg7: memref<8x384xf32, #tpu.memory_space<vmem>>) attributes {dimension_semantics = [#tpu.dimension_semantics<parallel>, #tpu.dimension_semantics<parallel>], iteration_bounds = array<i64: 2, 1>, scalar_prefetch = 0 : i64, scratch_operands = 1 : i64, tpu.core_type = #tpu.core_type<tc>, window_params = [{transform_indices = @transform_0, window_bounds = array<i64: 1, 8, 16>}, {pipeline_mode = #tpu.pipeline_mode<synchronous>, transform_indices = @transform_1, window_bounds = array<i64: 8, 3>}, {pipeline_mode = #tpu.pipeline_mode<synchronous>, transform_indices = @transform_2, window_bounds = array<i64: 16, 8>}, {pipeline_mode = #tpu.pipeline_mode<synchronous>, transform_indices = @transform_3, window_bounds = array<i64: 16, 1>}, {transform_indices = @transform_4, window_bounds = array<i64: 1, 16, 128>}]} {
    %c0_i32 = arith.constant 0 : i32
    %0 = arith.cmpi eq, %arg1, %c0_i32 : i32
    %1 = arith.extui %0 : i1 to i32
    %c0_i32_0 = arith.constant 0 : i32
    %2 = arith.cmpi ne, %1, %c0_i32_0 : i32
    scf.if %2 {
      %cst_14 = arith.constant 0.000000e+00 : f32
      %31 = vector.broadcast %cst_14 : f32 to vector<8x128xf32>
      %c0_15 = arith.constant 0 : index
      %c0_16 = arith.constant 0 : index
      %32 = vector.load %arg7[%c0_15, %c0_16] : memref<8x384xf32, #tpu.memory_space<vmem>>, vector<8x128xf32>
      tpu.vector_store %arg7[%c0_15, %c0_16], %31 {strides = array<i32>} : memref<8x384xf32, #tpu.memory_space<vmem>>, vector<8x128xf32>,
      %c0_17 = arith.constant 0 : index
      %c0_18 = arith.constant 0 : index
      %c0_19 = arith.constant 0 : index
      %33 = vector.load %arg2[%c0_17, %c0_18, %c0_19] : memref<1x8x16xf32, #tpu.memory_space<vmem>>, vector<1x8x16xf32>
      %34 = vector.shape_cast %33 : vector<1x8x16xf32> to vector<8x16xf32>
      %c0_20 = arith.constant 0 : index
      %c128_21 = arith.constant 128 : index
      %35 = vector.load %arg7[%c0_20, %c128_21] : memref<8x384xf32, #tpu.memory_space<vmem>>, vector<8x16xf32>
      tpu.vector_store %arg7[%c0_20, %c128_21], %34 {strides = array<i32>} : memref<8x384xf32, #tpu.memory_space<vmem>>, vector<8x16xf32>,
      %cst_22 = arith.constant 0.000000e+00 : f32
      %36 = vector.broadcast %cst_22 : f32 to vector<8x240xf32>
      %c0_23 = arith.constant 0 : index
      %c144 = arith.constant 144 : index
      %37 = vector.load %arg7[%c0_23, %c144] : memref<8x384xf32, #tpu.memory_space<vmem>>, vector<8x240xf32>
      tpu.vector_store %arg7[%c0_23, %c144], %36 {strides = array<i32>} : memref<8x384xf32, #tpu.memory_space<vmem>>, vector<8x240xf32>,
    } else {
    }
    %c0 = arith.constant 0 : index
    %c0_1 = arith.constant 0 : index
    %3 = vector.load %arg3[%c0, %c0_1] : memref<8x3xf32, #tpu.memory_space<vmem>>, vector<8x3xf32>
    %cst = arith.constant 0.000000e+00 : f32
    %4 = vector.broadcast %cst : f32 to vector<8x128xf32>
    %c0_2 = arith.constant 0 : index
    %c127 = arith.constant 127 : index
    %5 = vector.load %arg7[%c0_2, %c127] : memref<8x384xf32, #tpu.memory_space<vmem>>, vector<8x128xf32>
    %6 = vector.extract_strided_slice %3 {offsets = [0, 0], sizes = [8, 1], strides = [1, 1]} : vector<8x3xf32> to vector<8x1xf32>
    %7 = vector.broadcast %6 : vector<8x1xf32> to vector<8x128xf32>
    %8 = arith.mulf %5, %7 : vector<8x128xf32>
    %9 = arith.addf %4, %8 : vector<8x128xf32>
    %c0_3 = arith.constant 0 : index
    %c128 = arith.constant 128 : index
    %10 = vector.load %arg7[%c0_3, %c128] : memref<8x384xf32, #tpu.memory_space<vmem>>, vector<8x128xf32>
    %11 = vector.extract_strided_slice %3 {offsets = [0, 1], sizes = [8, 1], strides = [1, 1]} : vector<8x3xf32> to vector<8x1xf32>
    %12 = vector.broadcast %11 : vector<8x1xf32> to vector<8x128xf32>
    %13 = arith.mulf %10, %12 : vector<8x128xf32>
    %14 = arith.addf %9, %13 : vector<8x128xf32>
    %c0_4 = arith.constant 0 : index
    %c129 = arith.constant 129 : index
    %15 = vector.load %arg7[%c0_4, %c129] : memref<8x384xf32, #tpu.memory_space<vmem>>, vector<8x128xf32>
    %16 = vector.extract_strided_slice %3 {offsets = [0, 2], sizes = [8, 1], strides = [1, 1]} : vector<8x3xf32> to vector<8x1xf32>
    %17 = vector.broadcast %16 : vector<8x1xf32> to vector<8x128xf32>
    %18 = arith.mulf %15, %17 : vector<8x128xf32>
    %19 = arith.addf %14, %18 : vector<8x128xf32>
    %c0_5 = arith.constant 0 : index
    %c0_6 = arith.constant 0 : index
    %20 = vector.load %arg4[%c0_5, %c0_6] : memref<16x8xbf16, #tpu.memory_space<vmem>>, vector<16x8xbf16>
    %21 = arith.truncf %19 : vector<8x128xf32> to vector<8x128xbf16>
    %cst_7 = arith.constant dense<0.000000e+00> : vector<16x128xf32>
    %22 = tpu.matmul %20, %21, %cst_7 {dimension_numbers = #tpu.dot_dimension_numbers<[1], [0], [0], [1], [0, 0, 1, 1], [], []>} : vector<16x8xbf16>, vector<8x128xbf16>, vector<16x128xf32> -> vector<16x128xf32>
    %c0_8 = arith.constant 0 : index
    %c0_9 = arith.constant 0 : index
    %23 = vector.load %arg5[%c0_8, %c0_9] : memref<16x1xf32, #tpu.memory_space<vmem>>, vector<16x1xf32>
    %24 = vector.broadcast %23 : vector<16x1xf32> to vector<16x128xf32>
    %25 = arith.addf %22, %24 : vector<16x128xf32>
    %cst_10 = arith.constant 0.000000e+00 : f32
    %26 = vector.broadcast %cst_10 : f32 to vector<16x128xf32>
    %27 = arith.maximumf %25, %26 : vector<16x128xf32>
    %c0_11 = arith.constant 0 : index
    %c0_12 = arith.constant 0 : index
    %c0_13 = arith.constant 0 : index
    %28 = vector.load %arg6[%c0_11, %c0_12, %c0_13] : memref<1x16x128xf32, #tpu.memory_space<vmem>>, vector<1x16x128xf32>
    %29 = vector.shape_cast %28 : vector<1x16x128xf32> to vector<16x128xf32>
    %30 = vector.shape_cast %27 : vector<16x128xf32> to vector<1x16x128xf32>
    tpu.vector_store %arg6[%c0_11, %c0_12, %c0_13], %30 {strides = array<i32>} : memref<1x16x128xf32, #tpu.memory_space<vmem>>, vector<1x16x128xf32>,
    return
  }
  func.func @transform_0(%arg0: i32, %arg1: i32) -> (i32, i32, i32) {
    %c0_i32 = arith.constant 0 : i32
    %c0_i32_0 = arith.constant 0 : i32
    %c0_i32_1 = arith.constant 0 : i32
    return %arg0, %c0_i32, %c0_i32_0 : i32, i32, i32
  }
  func.func @transform_1(%arg0: i32, %arg1: i32) -> (i32, i32) {
    %c0_i32 = arith.constant 0 : i32
    %c0_i32_0 = arith.constant 0 : i32
    %c0_i32_1 = arith.constant 0 : i32
    return %c0_i32, %c0_i32_0 : i32, i32
  }
  func.func @transform_2(%arg0: i32, %arg1: i32) -> (i32, i32) {
    %c0_i32 = arith.constant 0 : i32
    %c0_i32_0 = arith.constant 0 : i32
    %c0_i32_1 = arith.constant 0 : i32
    return %c0_i32, %c0_i32_0 : i32, i32
  }
  func.func @transform_3(%arg0: i32, %arg1: i32) -> (i32, i32) {
    %c0_i32 = arith.constant 0 : i32
    %c0_i32_0 = arith.constant 0 : i32
    %c0_i32_1 = arith.constant 0 : i32
    return %c0_i32, %c0_i32_0 : i32, i32
  }
  func.func @transform_4(%arg0: i32, %arg1: i32) -> (i32, i32, i32) {
    %c0_i32 = arith.constant 0 : i32
    %c0_i32_0 = arith.constant 0 : i32
    return %arg0, %c0_i32, %arg1 : i32, i32, i32
  }
}

</mosaic_0001>

<llo_original>
// kernel: tpu_custom_call.1
$region0: #{tpu_custom_call.1}
  #allocation0 [shape = 'u32[]', space=smem, size = 0x4, offset = 0x4, fixed_abs, tag = 'smem constant byte address 0x4 - core index']
  #allocation1 [shape = 'u32[72,128]{1,0:T(1,128)}', space=vmem, size = 0x9000, scoped, tag = 'internal scratch']
  #allocation2 [shape = 'f32[8,384]{1,0:T(8,128)}', space=vmem, size = 0x3000, scoped, tag = 'scratch operand']
  %s0 = inlined_call_operand.vmem [shape: f32[2,8,16], index: 0, kind: input, shape index: {}]
  %s1 = inlined_call_operand.vmem [shape: f32[8,3], index: 1, kind: input, shape index: {}]
  %s2 = inlined_call_operand.vmem [shape: bf16[16,8], index: 2, kind: input, shape index: {}]
  %s3 = inlined_call_operand.vmem [shape: f32[16,1], index: 3, kind: input, shape index: {}]
  %s4 = inlined_call_operand.hbm [shape: f32[2,16,128], index: 4, kind: output, shape index: {}]
  %s5 = sld [smem:[#allocation0]]
  $region53: #{tpu_custom_call.1} parent=0
    _
  %s7 = ssub.s32 1, %s5
  %s8 = scalar_select 0, %s7, %s5
  $region1: #{tpu_custom_call.1} parent=0
    #allocation3 [shape = 'u8[16384]{0}', space=vmem, size = 0x4000, scoped, tag = 'output window, operand 0']
    #allocation4 [shape = 's32[2]{0}', space=sflag, size = 0x8, scoped, tag = 'scoped memory for tpu_custom_call.1']
    %9 = vsyncpa [#allocation4], 0
    %s10 = scalar_lea.sflag [#allocation4], 1
    %11 = vsyncpa %s10, 0
    loop: start=0, step=1, limit=4
    $region2: #{tpu_custom_call.1} parent=1 // loop_pre_header
      _
    $region3: #{tpu_custom_call.1} parent=1 // loop_header
      %s13 = sphi 0, %s17
      %p14 = scmp.ge.s32.totalorder %s13, 4
      %s20 = sphi 0, %s32
      %s21 = sphi 0, %s28
      %s22 = sphi 0, %s20
      %s23 = sphi 0, %s21
      %s24 = sphi 0, %s22
      %s25 = sphi 0, %s23
      %s35 = sphi 0, %s37
      %s38 = sphi 0, %s35
      %s39 = sphi 0, %s38
      %s55 = sphi 0, %s39
      %s59 = sphi 0, %s59
      %s61 = sphi 0, %s59
      %s62 = sphi 0, %s61
      %s76 = sphi 0, %s62
      %s80 = sphi 0, %s80
      %s82 = sphi 0, %s80
      %s83 = sphi 0, %s82
      %s97 = sphi 0, %s83
      %s101 = sphi 0, %s101
      %s103 = sphi 0, %s101
      %s104 = sphi 0, %s103
      %s118 = sphi 0, %s104
      %s126 = sphi 0, %s128
      %s129 = sphi 0, %s126
      %s130 = sphi 0, %s129
      %s146 = sphi 0, %s130
    $region4: #{tpu_custom_call.1} parent=1 // loop_header_branch
      %16 = sbr.rel (%p14) target = $region8
    $region5: #{tpu_custom_call.1} parent=1 // loop_body
      %s18 = ssub.s32 %s13, 1
      %s19 = ssub.s32 %s13, 2
      %s26 = sadd.s32 1, %s21
      %p27 = scmp.ge.s32.totalorder %s26, 1
      %s28 = scalar_select %p27, 0, %s26
      %s29 = sadd.s32 1, %s20
      %s30 = scalar_select %p27, %s29, %s20
      %p31 = scmp.ge.s32.totalorder %s30, 2
      %s32 = scalar_select %p31, 0, %s30
      %s33 = ssub.s32 %s20, %s32
      %p34 = scmp.eq.s32.totalorder %s33, 0
      %s36 = sadd.s32 %s35, 1
      %s37 = scalar_select %p34, %s35, %s36
      %p40 = pneg %p34
      %p41 = scmp.eq.s32.totalorder %s13, 1
      %p42 = por %p40, %p41
      %p43 = scmp.ne.s32.totalorder %s35, %s38
      %p44 = scmp.eq.s32.totalorder %s13, 0
      %p45 = por %p43, %p44
      %p46 = scmp.ne.s32.totalorder %s35, %s38
      %p47 = scmp.eq.s32.totalorder %s18, 1
      %p48 = por %p46, %p47
      %p49 = scmp.ne.s32.totalorder %s38, %s39
      %p50 = scmp.eq.s32.totalorder %s18, 0
      %p51 = por %p49, %p50
      %p52 = scmp.ne.s32.totalorder %s38, %s39
      %p53 = scmp.eq.s32.totalorder %s19, 1
      %p54 = por %p52, %p53
      %p56 = scmp.ne.s32.totalorder %s39, %s55
      %p57 = scmp.eq.s32.totalorder %s19, 0
      %p58 = por %p56, %p57
      %s60 = sadd.s32 %s59, 1
      %p63 = scmp.eq.s32.totalorder %s13, 1
      %p64 = scmp.ne.s32.totalorder %s59, %s61
      %p65 = scmp.eq.s32.totalorder %s13, 0
      %p66 = por %p64, %p65
      %p67 = scmp.ne.s32.totalorder %s59, %s61
      %p68 = scmp.eq.s32.totalorder %s18, 1
      %p69 = por %p67, %p68
      %p70 = scmp.ne.s32.totalorder %s61, %s62
      %p71 = scmp.eq.s32.totalorder %s18, 0
      %p72 = por %p70, %p71
      %p73 = scmp.ne.s32.totalorder %s61, %s62
      %p74 = scmp.eq.s32.totalorder %s19, 1
      %p75 = por %p73, %p74
      %p77 = scmp.ne.s32.totalorder %s62, %s76
      %p78 = scmp.eq.s32.totalorder %s19, 0
      %p79 = por %p77, %p78
      %s81 = sadd.s32 %s80, 1
      %p84 = scmp.eq.s32.totalorder %s13, 1
      %p85 = scmp.ne.s32.totalorder %s80, %s82
      %p86 = scmp.eq.s32.totalorder %s13, 0
      %p87 = por %p85, %p86
      %p88 = scmp.ne.s32.totalorder %s80, %s82
      %p89 = scmp.eq.s32.totalorder %s18, 1
      %p90 = por %p88, %p89
      %p91 = scmp.ne.s32.totalorder %s82, %s83
      %p92 = scmp.eq.s32.totalorder %s18, 0
      %p93 = por %p91, %p92
      %p94 = scmp.ne.s32.totalorder %s82, %s83
      %p95 = scmp.eq.s32.totalorder %s19, 1
      %p96 = por %p94, %p95
      %p98 = scmp.ne.s32.totalorder %s83, %s97
      %p99 = scmp.eq.s32.totalorder %s19, 0
      %p100 = por %p98, %p99
      %s102 = sadd.s32 %s101, 1
      %p105 = scmp.eq.s32.totalorder %s13, 1
      %p106 = scmp.ne.s32.totalorder %s101, %s103
      %p107 = scmp.eq.s32.totalorder %s13, 0
      %p108 = por %p106, %p107
      %p109 = scmp.ne.s32.totalorder %s101, %s103
      %p110 = scmp.eq.s32.totalorder %s18, 1
      %p111 = por %p109, %p110
      %p112 = scmp.ne.s32.totalorder %s103, %s104
      %p113 = scmp.eq.s32.totalorder %s18, 0
      %p114 = por %p112, %p113
      %p115 = scmp.ne.s32.totalorder %s103, %s104
      %p116 = scmp.eq.s32.totalorder %s19, 1
      %p117 = por %p115, %p116
      %p119 = scmp.ne.s32.totalorder %s104, %s118
      %p120 = scmp.eq.s32.totalorder %s19, 0
      %p121 = por %p119, %p120
      %s122 = ssub.s32 %s20, %s32
      %s123 = ssub.s32 %s21, %s28
      %s124 = sor.u32 %s122, %s123
      %p125 = scmp.eq.s32.totalorder %s124, 0
      %s127 = sadd.s32 %s126, 1
      %s128 = scalar_select %p125, %s126, %s127
      %p131 = pneg %p125
      %p132 = scmp.eq.s32.totalorder %s13, 1
      %p133 = por %p131, %p132
      %p134 = scmp.ne.s32.totalorder %s126, %s129
      %p135 = scmp.eq.s32.totalorder %s13, 0
      %p136 = por %p134, %p135
      %p137 = scmp.ne.s32.totalorder %s126, %s129
      %p138 = scmp.eq.s32.totalorder %s18, 1
      %p139 = por %p137, %p138
      %p140 = scmp.ne.s32.totalorder %s129, %s130
      %p141 = scmp.eq.s32.totalorder %s18, 0
      %p142 = por %p140, %p141
      %p143 = scmp.ne.s32.totalorder %s129, %s130
      %p144 = scmp.eq.s32.totalorder %s19, 1
      %p145 = por %p143, %p144
      %p147 = scmp.ne.s32.totalorder %s130, %s146
      %p148 = scmp.eq.s32.totalorder %s19, 0
      %p149 = por %p147, %p148
      %p150 = scmp.le.s32.totalorder 1, %s13
      %p151 = scmp.lt.s32.totalorder %s13, 3
      %p152 = pnand %p150, %p151
      %p153 = pneg %p152
      // Predicated region
      $region9: #{tpu_custom_call.1} parent=5 // pred_check
        _
      $region10: #{tpu_custom_call.1} parent=5 // pred_check_branch
        %155 = sbr.rel (%p152) target = $region12
      $region11: #{tpu_custom_call.1} parent=5 // pred_region
        %s156 = ssub.s32 %s13, 1
        // Predicated region
        $region13: #{tpu_custom_call.1} parent=11 // pred_check
          %p157 = pneg %p72
        $region14: #{tpu_custom_call.1} parent=11 // pred_check_branch
          %159 = sbr.rel (%p157) target = $region16
        $region15: #{tpu_custom_call.1} parent=11 // pred_region
          _
        $region16: #{tpu_custom_call.1} parent=11 // pred_fallthru
          _
        // Predicated region
        $region17: #{tpu_custom_call.1} parent=11 // pred_check
          %p160 = pneg %p93
        $region18: #{tpu_custom_call.1} parent=11 // pred_check_branch
          %162 = sbr.rel (%p160) target = $region20
        $region19: #{tpu_custom_call.1} parent=11 // pred_region
          _
        $region20: #{tpu_custom_call.1} parent=11 // pred_fallthru
          _
        // Predicated region
        $region21: #{tpu_custom_call.1} parent=11 // pred_check
          %p163 = pneg %p114
        $region22: #{tpu_custom_call.1} parent=11 // pred_check_branch
          %165 = sbr.rel (%p163) target = $region24
        $region23: #{tpu_custom_call.1} parent=11 // pred_region
          _
        $region24: #{tpu_custom_call.1} parent=11 // pred_fallthru
          _
      $region12: #{tpu_custom_call.1} parent=5 // pred_fallthru
        _
      %p166 = scmp.lt.s32.totalorder %s13, 2
      // Predicated region
      $region25: #{tpu_custom_call.1} parent=5 // pred_check
        %p167 = pneg %p166
      $region26: #{tpu_custom_call.1} parent=5 // pred_check_branch
        %169 = sbr.rel (%p167) target = $region28
      $region27: #{tpu_custom_call.1} parent=5 // pred_region
        // Predicated region
        $region29: #{tpu_custom_call.1} parent=27 // pred_check
          %p170 = pneg %p45
        $region30: #{tpu_custom_call.1} parent=27 // pred_check_branch
          %172 = sbr.rel (%p170) target = $region32
        $region31: #{tpu_custom_call.1} parent=27 // pred_region
          %p173 = scmp.lt.s32.totalorder %s20, 1
          %s174 = scalar_select %p173, %s20, 1
          %s175 = smul.addr %s174, 8
          %s176 = scalar_lea.vmem %s0, %s175
        $region32: #{tpu_custom_call.1} parent=27 // pred_fallthru
          _
      $region28: #{tpu_custom_call.1} parent=5 // pred_fallthru
        _
      %p177 = scmp.le.s32.totalorder 1, %s13
      %p178 = scmp.lt.s32.totalorder %s13, 3
      %p179 = pnand %p177, %p178
      %p180 = pneg %p179
      // Predicated region
      $region33: #{tpu_custom_call.1} parent=5 // pred_check
        _
      $region34: #{tpu_custom_call.1} parent=5 // pred_check_branch
        %182 = sbr.rel (%p179) target = $region36
      $region35: #{tpu_custom_call.1} parent=5 // pred_region
        %s183 = ssub.s32 %s13, 1
        %p184 = scmp.lt.s32.totalorder %s22, 1
        %s185 = scalar_select %p184, %s22, 1
        %s186 = smul.addr %s185, 8
        %s187 = scalar_lea.vmem %s0, %s186
        %p188 = pneg %p51
        %p189 = pneg %p48
        %p190 = pneg %p72
        %p191 = pneg %p69
        %p192 = pneg %p93
        %p193 = pneg %p90
        %p194 = pneg %p114
        %p195 = pneg %p111
        %p196 = pneg %p142
        %p197 = pneg %p139
        %s198 = sand.u32 %s129, 1
        %s199 = scalar_lea.sflag [#allocation4], %s198
        %s200 = sand.u32 %s129, 1
        %s201 = smul.addr %s200, 16
        %s202 = scalar_lea.vmem [#allocation3], %s201
        %p203 = scmp.lt.s32.totalorder %s22, 1
        %s204 = scalar_select %p203, %s22, 1
        %s205 = smul.addr %s204, 8
        %s206 = scalar_lea.vmem %s0, %s205
        %p208 = scmp.eq.s32.totalorder %s23, 0
        // Predicated region
        $region37: #{tpu_custom_call.1} parent=35 // pred_check
          %p209 = pneg %p208
        $region38: #{tpu_custom_call.1} parent=35 // pred_check_branch
          %211 = sbr.rel (%p209) target = $region40
        $region39: #{tpu_custom_call.1} parent=35 // pred_region
          %212 = vst [vmem:[#allocation2] sm:$0xff] 0.0
          %v213 = vld [vmem:[%s206] sm:$0xff]
          %vm214 = vcmask 130048
          %215 = vst.msk [vmem:[#allocation2 + $0x8] sm:$0xff] %vm214, %v213
          %vm216 = vcmask 1047680
          %217 = vst.msk [vmem:[#allocation2 + $0x8] sm:$0xff] %vm216, 0.0
          %218 = vst [vmem:[#allocation2 + $0x10] sm:$0xff] 0.0
        $region40: #{tpu_custom_call.1} parent=35 // pred_fallthru
          _
        %v219 = vld [vmem:[%s1] sm:$0xff]
        %v220 = vld [vmem:[#allocation2] sm:$0xff]
        %v221 = vld [vmem:[#allocation2 + $0x8] sm:$0xff]
        %223 = vset.pattern.permute.xlu0 0
        %224 = vperm.xlu0 %223, %v219
        %v225 = vpop.permute.xlu0 %224
        %v227 = vmul.f32 %v220, %v225
        %v228 = vmul.f32 %v221, %v225
        %v229 = vadd.f32 %v227, 0.0
        %v230 = vadd.f32 %v228, 0.0
        %231 = vset.pattern.permute.xlu0 1
        %232 = vperm.xlu0 %231, %v219
        %v233 = vpop.permute.xlu0 %232
        %v235 = vmul.f32 %v221, %v233
        %237 = vrot.lane.b32.xlu0 %v235, 127
        %v238 = vpop.permute.xlu0 %237
        %v240 = vadd.f32 %v229, %v238
        %v241 = vadd.f32 %v230, %v238
        %v242 = vld [vmem:[#allocation2 + $0x8] sm:$0xff]
        %v243 = vld [vmem:[#allocation2 + $0x10] sm:$0xff]
        %244 = vset.pattern.permute.xlu0 2
        %245 = vperm.xlu0 %244, %v219
        %v246 = vpop.permute.xlu0 %245
        %v248 = vmul.f32 %v242, %v246
        %v249 = vmul.f32 %v243, %v246
        %252 = vrot.lane.b32.xlu0 %v248, 126
        %v253 = vpop.permute.xlu0 %252
        %254 = vrot.lane.b32.xlu0 %v249, 126
        %v255 = vpop.permute.xlu0 %254
        %vm256 = vcmask 1031168
        %v257 = vsel %vm256, %v253, %v255
        %v260 = vadd.f32 %v240, %v253
        %v261 = vadd.f32 %v241, %v257
        %v262 = vld [vmem:[%s2] sm:$0xf]
        %v263 = vld [vmem:[%s2 + $0x4] sm:$0xf]
        %v264 = vpack.c.bf16 %v260, %v260
        %v265 = vpack.c.bf16 %v261, %v261
        %v266 = vld [vmem:[%s3] sm:$0xff]
        %v267 = vld [vmem:[%s3 + $0x8] sm:$0xff]
        %269 = vset.pattern.permute.xlu0 0
        %270 = vperm.xlu0 %269, %v266
        %v271 = vpop.permute.xlu0 %270
        %274 = vset.pattern.permute.xlu0 0
        %275 = vperm.xlu0 %274, %v267
        %v276 = vpop.permute.xlu0 %275
        %v280 = vunpack.c.l.b16 %v262
        %v281 = vunpack.c.l.b16 %v263
        %v282 = vpack.c.b16 %v281, %v280
        %285 = vrot.lane.b32.xlu0 %v264, 1
        %v286 = vpop.permute.xlu0 %285
        %287 = vrot.lane.b32.xlu0 %v265, 1
        %v288 = vpop.permute.xlu0 %287
        %vm289 = vcmask 7168
        %v290 = vsel %vm289, %v286, %v288
        %vm291 = vcmask 64512
        %v293 = vsel %vm291, %v282, 0
        %vm295 = vcmask 1043456
        %v297 = vsel %vm295, %v290, 0
        %299 = vmatpush.bf16.msra.mxu0 0
        %300 = vmatpush.bf16.msra.mxu0 0
        %301 = vmatpush.bf16.msra.mxu0 0
        %302 = vmatpush.bf16.msra.mxu0 0
        %303 = vmatpush.bf16.msra.mxu0 0
        %304 = vmatpush.bf16.msra.mxu0 0
        %305 = vmatpush.bf16.msra.mxu0 0
        %306 = vmatpush.bf16.msra.mxu0 %v297
        %307 = vmatmul.bf16.gmra.mxu0 %v293
        %v308 = vpop.f32.mrf.mxu0
        %v309 = vadd.f32 %v271, %v308
        %v310 = vpop.f32.mrf.mxu0
        %v311 = vadd.f32 %v276, %v310
        %312 = vdwg.mxu0
        %v313 = vmax.f32 %v309, 0.0
        %v314 = vmax.f32 %v311, 0.0
        %315 = vst [vmem:[%s202] sm:$0xff] %v313
        %316 = vst [vmem:[%s202 + $0x8] sm:$0xff] %v314
        %s317 = sand.u32 %s129, 1
        %s318 = scalar_lea.sflag [#allocation4], %s317
        %s319 = sand.u32 %s129, 1
        %s320 = smul.addr %s319, 16
        %s321 = scalar_lea.vmem [#allocation3], %s320
        // Predicated region
        $region41: #{tpu_custom_call.1} parent=35 // pred_check
          %p322 = pneg %p139
        $region42: #{tpu_custom_call.1} parent=35 // pred_check_branch
          %324 = sbr.rel (%p322) target = $region44
        $region43: #{tpu_custom_call.1} parent=35 // pred_region
          %326 = vsyncadd %s318, 0
          %s327 = smul.addr %s22, 2
          %s328 = sadd.s32 %s23, %s327
          %s329 = smul.addr %s328, 8
          %s330 = scalar_lea.hbm %s4, %s329
          %s331 = sshll.u32 %s321, 4
          %s332 = int_to_ptr.vmem [resolvable:$true] %s331
          %s333 = sshll.u32 %s330, 4
          %s334 = int_to_ptr.hbm [resolvable:$true] %s333
          %339 = dma.vmem_to_hbm [thread:$0]  %s332, 256, %s334, %s318, 128, 128, 8
        $region44: #{tpu_custom_call.1} parent=35 // pred_fallthru
          _
      $region36: #{tpu_custom_call.1} parent=5 // pred_fallthru
        _
      %p340 = scmp.le.s32.totalorder 2, %s13
      // Predicated region
      $region45: #{tpu_custom_call.1} parent=5 // pred_check
        %p341 = pneg %p340
      $region46: #{tpu_custom_call.1} parent=5 // pred_check_branch
        %343 = sbr.rel (%p341) target = $region48
      $region47: #{tpu_custom_call.1} parent=5 // pred_region
        %s344 = ssub.s32 %s13, 2
        // Predicated region
        $region49: #{tpu_custom_call.1} parent=47 // pred_check
          %p345 = pneg %p145
        $region50: #{tpu_custom_call.1} parent=47 // pred_check_branch
          %347 = sbr.rel (%p345) target = $region52
        $region51: #{tpu_custom_call.1} parent=47 // pred_region
          %s348 = sand.u32 %s130, 1
          %s349 = scalar_lea.sflag [#allocation4], %s348
          %s350 = sand.u32 %s130, 1
          %s351 = smul.addr %s350, 16
          %s352 = scalar_lea.vmem [#allocation3], %s351
          %354 = dma.done %s349, 256
        $region52: #{tpu_custom_call.1} parent=47 // pred_fallthru
          _
      $region48: #{tpu_custom_call.1} parent=5 // pred_fallthru
        _
    $region6: #{tpu_custom_call.1} parent=1 // loop_footer
      %s17 = sadd.s32 1, %s13
    $region7: #{tpu_custom_call.1} parent=1 // loop_footer_branch
      %12 = sbr.rel target = $region3
    $region8: #{tpu_custom_call.1} parent=1 // loop_exit
      _
    %355 = vsyncpa [#allocation4], 1
    %s356 = scalar_lea.sflag [#allocation4], 1
    %357 = vsyncpa %s356, 1

</llo_original>
